<compile_context>
chip_gen: v5e
topology: v5e:2x2
jax: 0.10.0
libtpu: 0.0.40
codegen_flags: <defaults>
</compile_context>

<pallas_src>
import jax
import jax.numpy as jnp
from jax import lax
from jax.experimental import pallas as pl
from jax.experimental.pallas import tpu as pltpu


def _cross_attention_kernel(x1_ref, x2_ref, x3_ref,
                            wq_ref, wk_ref, wv_ref,
                            bq_ref, bk_ref, bv_ref,
                            o_ref,
                            q_scr, m_scr, l_scr, acc_scr):
    """One (batch, q-tile, k-tile) grid step.

    x1_ref: (1, tq, C)   query-side input tile
    x2_ref: (1, tk, C)   key-side input tile
    x3_ref: (1, tk, C)   value-side input tile
    w*_ref: (C, Cp)      transposed, lane-padded Linear weights (resident across the grid)
    b*_ref: (1, Cp)      lane-padded biases
    o_ref : (1, tq, Cp)  output tile (written on the last k-tile only)
    scratch: q tile (tq,Cp), running max (tq,1), running sum (tq,1), accumulator (tq,Cp), all f32
    """
    ki = pl.program_id(2)
    n_k = pl.num_programs(2)

    @pl.when(ki == 0)
    def _init():
        # Query projection once per (batch, q-tile); reused across all key tiles.
        q_scr[...] = (jnp.dot(x1_ref[0], wq_ref[...],
                              preferred_element_type=jnp.float32) + bq_ref[...])
        m_scr[...] = jnp.full(m_scr.shape, -jnp.inf, jnp.float32)
        l_scr[...] = jnp.zeros(l_scr.shape, jnp.float32)
        acc_scr[...] = jnp.zeros(acc_scr.shape, jnp.float32)

    # Key / value projections for this key tile (f32 in, f32 accumulate).
    k = jnp.dot(x2_ref[0], wk_ref[...], preferred_element_type=jnp.float32) + bk_ref[...]
    v = jnp.dot(x3_ref[0], wv_ref[...], preferred_element_type=jnp.float32) + bv_ref[...]

    # scores = q @ kᵀ via contraction over channels (no in-kernel transpose); bf16 MXU feed,
    # f32 accumulation.  Padded channels are zero so they contribute nothing.
    s = lax.dot_general(
        q_scr[...].astype(jnp.bfloat16), k.astype(jnp.bfloat16),
        dimension_numbers=(((1,), (1,)), ((), ())),
        preferred_element_type=jnp.float32)                       # (tq, tk)
    # NOTE: no 1/sqrt(C) scaling — the reference PyTorch module does not scale.

    # Online (flash-style) softmax update; statistics stay f32.
    m_new = jnp.maximum(m_scr[...], jnp.max(s, axis=-1, keepdims=True))
    alpha = jnp.exp(m_scr[...] - m_new)
    p = jnp.exp(s - m_new)
    l_scr[...] = alpha * l_scr[...] + jnp.sum(p, axis=-1, keepdims=True)
    acc_scr[...] = alpha * acc_scr[...] + jnp.dot(
        p.astype(jnp.bfloat16), v.astype(jnp.bfloat16),
        preferred_element_type=jnp.float32)                       # (tq, Cp)
    m_scr[...] = m_new

    @pl.when(ki == n_k - 1)
    def _finalize():
        inv_l = pl.reciprocal(l_scr[...], approx=True)            # EUP slot (otherwise idle)
        o_ref[0] = (acc_scr[...] * inv_l).astype(o_ref.dtype)


def prepare_params(wq, bq, wk, bk, wv, bv, dtype=jnp.float32):
    """Init-time (once, NOT per call): transpose PyTorch Linear weights to (in, out) and
    lane-pad the output channel dim to a multiple of 128 only when needed."""
    C = wq.shape[0]
    Cp = C if C % 128 == 0 else ((C + 127) // 128) * 128

    def prep_w(w):                       # (out, in) -> (in, out_padded)
        wt = w.T.astype(dtype)
        return wt if Cp == C else jnp.pad(wt, ((0, 0), (0, Cp - C)))

    def prep_b(b):
        b = b.astype(dtype)
        if Cp != C:
            b = jnp.pad(b, (0, Cp - C))
        return b.reshape(1, Cp)

    return dict(wq=prep_w(wq), wk=prep_w(wk), wv=prep_w(wv),
                bq=prep_b(bq), bk=prep_b(bk), bv=prep_b(bv), C=C, Cp=Cp)


def _default_tile(s, cap=128):
    """Largest tile <= cap that divides s and is a multiple of 8 (or the full extent)."""
    if s <= cap:
        return s
    for t in range(cap, 0, -8):
        if s % t == 0:
            return t
    return s


def cross_attention(params, x1, x2, x3, *, tq=None, tk=None):
    """x1/x2/x3: (B, S, C) with C == params['C']."""
    B, S, C = x1.shape
    assert x2.shape == (B, S, C) and x3.shape == (B, S, C)
    assert C == params["C"]
    Cp = params["Cp"]
    dt = x1.dtype

    tq = tq if tq is not None else _default_tile(S)
    tk = tk if tk is not None else _default_tile(S)
    assert S % tq == 0 and (tq == S or tq % 8 == 0), "tq must divide S and be 8-aligned"
    assert S % tk == 0 and (tk == S or tk % 8 == 0), "tk must divide S and be 8-aligned"
    n_q, n_k = S // tq, S // tk

    # Per-step VMEM ~ weights (3*C*Cp*4B, resident) + tiles; for very large C raise
    # vmem_limit_bytes in CompilerParams or tile the channel dim (v7x: 64 MiB physical).
    out = pl.pallas_call(
        _cross_attention_kernel,
        out_shape=jax.ShapeDtypeStruct((B, S, Cp), dt),
        grid_spec=pltpu.PrefetchScalarGridSpec(
            num_scalar_prefetch=0,
            grid=(B, n_q, n_k),
            in_specs=[
                pl.BlockSpec((1, tq, C), lambda b, qi, ki: (b, qi, 0)),   # x1 (query side)
                pl.BlockSpec((1, tk, C), lambda b, qi, ki: (b, ki, 0)),   # x2 (key side)
                pl.BlockSpec((1, tk, C), lambda b, qi, ki: (b, ki, 0)),   # x3 (value side)
                pl.BlockSpec((C, Cp), lambda b, qi, ki: (0, 0)),          # Wq^T
                pl.BlockSpec((C, Cp), lambda b, qi, ki: (0, 0)),          # Wk^T
                pl.BlockSpec((C, Cp), lambda b, qi, ki: (0, 0)),          # Wv^T
                pl.BlockSpec((1, Cp), lambda b, qi, ki: (0, 0)),          # bq
                pl.BlockSpec((1, Cp), lambda b, qi, ki: (0, 0)),          # bk
                pl.BlockSpec((1, Cp), lambda b, qi, ki: (0, 0)),          # bv
            ],
            out_specs=pl.BlockSpec((1, tq, Cp), lambda b, qi, ki: (b, qi, 0)),
            scratch_shapes=[
                pltpu.VMEM((tq, Cp), jnp.float32),   # q tile
                pltpu.VMEM((tq, 1), jnp.float32),    # running max
                pltpu.VMEM((tq, 1), jnp.float32),    # running denom
                pltpu.VMEM((tq, Cp), jnp.float32),   # output accumulator
            ],
        ),
        compiler_params=pltpu.CompilerParams(
            dimension_semantics=("parallel", "parallel", "arbitrary")),
    )(x1, x2, x3,
      params["wq"], params["wk"], params["wv"],
      params["bq"], params["bk"], params["bv"])

    return out if Cp == C else out[:, :, :C]


def cross_attention_ref(x1, x2, x3, wq, bq, wk, bk, wv, bv):
    q = x1 @ wq.T + bq
    k = x2 @ wk.T + bk
    v = x3 @ wv.T + bv
    scores = jnp.einsum("bqc,bkc->bqk", q, k)
    attn = jax.nn.softmax(scores, axis=-1)
    return jnp.einsum("bqk,bkc->bqc", attn, v)


def _run_case(key, B, S, C, tq=None, tk=None):
    ks = jax.random.split(key, 9)
    scale = 1.0 / (C ** 0.5)
    # PyTorch Linear layout: W (out, in), b (out,).
    wq = jax.random.uniform(ks[0], (C, C), jnp.float32, -scale, scale)
    bq = jax.random.uniform(ks[1], (C,), jnp.float32, -scale, scale)
    wk = jax.random.uniform(ks[2], (C, C), jnp.float32, -scale, scale)
    bk = jax.random.uniform(ks[3], (C,), jnp.float32, -scale, scale)
    wv = jax.random.uniform(ks[4], (C, C), jnp.float32, -scale, scale)
    bv = jax.random.uniform(ks[5], (C,), jnp.float32, -scale, scale)

    x1 = jax.random.normal(ks[6], (B, S, C), jnp.float32)
    x2 = jax.random.normal(ks[7], (B, S, C), jnp.float32)
    x3 = jax.random.normal(ks[8], (B, S, C), jnp.float32)

    # Init-time prep (pad/transpose weights once), then the per-call kernel.
    params = prepare_params(wq, bq, wk, bk, wv, bv)
    out = cross_attention(params, x1, x2, x3, tq=tq, tk=tk)
    out = jax.block_until_ready(out)

    ref = cross_attention_ref(x1, x2, x3, wq, bq, wk, bk, wv, bv)
    assert out.shape == (B, S, C)
    # Tolerance covers the bf16 MXU feed of the two attention matmuls + approx EUP
    # reciprocal; projections and softmax statistics stay f32.
    assert jnp.allclose(out, ref, atol=2e-2, rtol=2e-2), \
        f"mismatch vs pure-JAX reference (B={B}, S={S}, C={C})"


if __name__ == "__main__":
    key = jax.random.PRNGKey(0)
    k1, k2 = jax.random.split(key)

    # Small shape matching the module demo (padded-channel path, single k-tile).
    _run_case(k1, B=2, S=8, C=32)
    # Slightly larger case exercising multiple q/k tiles (online softmax) and the
    # no-padding path (C % 128 == 0).
    _run_case(k2, B=2, S=32, C=128, tq=16, tk=16)

    print("KERNEL_OK")
</pallas_src>

<mosaic_0001>
module attributes {stable_mosaic.version = 11 : i64} {
  func.func @_cross_attention_kernel(%arg0: i32, %arg1: i32, %arg2: i32, %arg3: memref<1x8x32xf32, #tpu.memory_space<vmem>>, %arg4: memref<1x8x32xf32, #tpu.memory_space<vmem>>, %arg5: memref<1x8x32xf32, #tpu.memory_space<vmem>>, %arg6: memref<32x128xf32, #tpu.memory_space<vmem>>, %arg7: memref<32x128xf32, #tpu.memory_space<vmem>>, %arg8: memref<32x128xf32, #tpu.memory_space<vmem>>, %arg9: memref<1x128xf32, #tpu.memory_space<vmem>>, %arg10: memref<1x128xf32, #tpu.memory_space<vmem>>, %arg11: memref<1x128xf32, #tpu.memory_space<vmem>>, %arg12: memref<1x8x128xf32, #tpu.memory_space<vmem>>, %arg13: memref<8x128xf32, #tpu.memory_space<vmem>>, %arg14: memref<8x1xf32, #tpu.memory_space<vmem>>, %arg15: memref<8x1xf32, #tpu.memory_space<vmem>>, %arg16: memref<8x128xf32, #tpu.memory_space<vmem>>) attributes {dimension_semantics = [#tpu.dimension_semantics<parallel>, #tpu.dimension_semantics<parallel>, #tpu.dimension_semantics<arbitrary>], iteration_bounds = array<i64: 2, 1, 1>, scalar_prefetch = 0 : i64, scratch_operands = 4 : i64, tpu.core_type = #tpu.core_type<tc>, window_params = [{transform_indices = @transform_0, window_bounds = array<i64: 1, 8, 32>}, {transform_indices = @transform_1, window_bounds = array<i64: 1, 8, 32>}, {transform_indices = @transform_2, window_bounds = array<i64: 1, 8, 32>}, {pipeline_mode = #tpu.pipeline_mode<synchronous>, transform_indices = @transform_3, window_bounds = array<i64: 32, 128>}, {pipeline_mode = #tpu.pipeline_mode<synchronous>, transform_indices = @transform_4, window_bounds = array<i64: 32, 128>}, {pipeline_mode = #tpu.pipeline_mode<synchronous>, transform_indices = @transform_5, window_bounds = array<i64: 32, 128>}, {pipeline_mode = #tpu.pipeline_mode<synchronous>, transform_indices = @transform_6, window_bounds = array<i64: 1, 128>}, {pipeline_mode = #tpu.pipeline_mode<synchronous>, transform_indices = @transform_7, window_bounds = array<i64: 1, 128>}, {pipeline_mode = #tpu.pipeline_mode<synchronous>, transform_indices = @transform_8, window_bounds = array<i64: 1, 128>}, {transform_indices = @transform_9, window_bounds = array<i64: 1, 8, 128>}]} {
    %c0_i32 = arith.constant 0 : i32
    %0 = arith.cmpi eq, %arg2, %c0_i32 : i32
    %1 = arith.extui %0 : i1 to i32
    %c0_i32_0 = arith.constant 0 : i32
    %2 = arith.cmpi ne, %1, %c0_i32_0 : i32
    scf.if %2 {
      %c0_37 = arith.constant 0 : index
      %c0_38 = arith.constant 0 : index
      %c0_39 = arith.constant 0 : index
      %49 = vector.load %arg3[%c0_37, %c0_38, %c0_39] : memref<1x8x32xf32, #tpu.memory_space<vmem>>, vector<1x8x32xf32>
      %50 = vector.shape_cast %49 : vector<1x8x32xf32> to vector<8x32xf32>
      %c0_40 = arith.constant 0 : index
      %c0_41 = arith.constant 0 : index
      %51 = vector.load %arg6[%c0_40, %c0_41] : memref<32x128xf32, #tpu.memory_space<vmem>>, vector<32x128xf32>
      %cst_42 = arith.constant dense<0.000000e+00> : vector<8x128xf32>
      %52 = tpu.matmul %50, %51, %cst_42 {dimension_numbers = #tpu.dot_dimension_numbers<[1], [0], [0], [1], [0, 0, 1, 1], [], []>} : vector<8x32xf32>, vector<32x128xf32>, vector<8x128xf32> -> vector<8x128xf32>
      %c0_43 = arith.constant 0 : index
      %c0_44 = arith.constant 0 : index
      %53 = vector.load %arg9[%c0_43, %c0_44] : memref<1x128xf32, #tpu.memory_space<vmem>>, vector<1x128xf32>
      %54 = vector.broadcast %53 : vector<1x128xf32> to vector<8x128xf32>
      %55 = arith.addf %52, %54 : vector<8x128xf32>
      %c0_45 = arith.constant 0 : index
      %c0_46 = arith.constant 0 : index
      %56 = vector.load %arg13[%c0_45, %c0_46] : memref<8x128xf32, #tpu.memory_space<vmem>>, vector<8x128xf32>
      tpu.vector_store %arg13[%c0_45, %c0_46], %55 {strides = array<i32>} : memref<8x128xf32, #tpu.memory_space<vmem>>, vector<8x128xf32>,
      %cst_47 = arith.constant 0xFF800000 : f32
      %57 = vector.broadcast %cst_47 : f32 to vector<8x1xf32>
      %c0_48 = arith.constant 0 : index
      %c0_49 = arith.constant 0 : index
      %58 = vector.load %arg14[%c0_48, %c0_49] : memref<8x1xf32, #tpu.memory_space<vmem>>, vector<8x1xf32>
      tpu.vector_store %arg14[%c0_48, %c0_49], %57 {strides = array<i32>} : memref<8x1xf32, #tpu.memory_space<vmem>>, vector<8x1xf32>,
      %cst_50 = arith.constant 0.000000e+00 : f32
      %59 = vector.broadcast %cst_50 : f32 to vector<8x1xf32>
      %c0_51 = arith.constant 0 : index
      %c0_52 = arith.constant 0 : index
      %60 = vector.load %arg15[%c0_51, %c0_52] : memref<8x1xf32, #tpu.memory_space<vmem>>, vector<8x1xf32>
      tpu.vector_store %arg15[%c0_51, %c0_52], %59 {strides = array<i32>} : memref<8x1xf32, #tpu.memory_space<vmem>>, vector<8x1xf32>,
      %cst_53 = arith.constant 0.000000e+00 : f32
      %61 = vector.broadcast %cst_53 : f32 to vector<8x128xf32>
      %c0_54 = arith.constant 0 : index
      %c0_55 = arith.constant 0 : index
      %62 = vector.load %arg16[%c0_54, %c0_55] : memref<8x128xf32, #tpu.memory_space<vmem>>, vector<8x128xf32>
      tpu.vector_store %arg16[%c0_54, %c0_55], %61 {strides = array<i32>} : memref<8x128xf32, #tpu.memory_space<vmem>>, vector<8x128xf32>,
    } else {
    }
    %c0 = arith.constant 0 : index
    %c0_1 = arith.constant 0 : index
    %c0_2 = arith.constant 0 : index
    %3 = vector.load %arg4[%c0, %c0_1, %c0_2] : memref<1x8x32xf32, #tpu.memory_space<vmem>>, vector<1x8x32xf32>
    %4 = vector.shape_cast %3 : vector<1x8x32xf32> to vector<8x32xf32>
    %c0_3 = arith.constant 0 : index
    %c0_4 = arith.constant 0 : index
    %5 = vector.load %arg7[%c0_3, %c0_4] : memref<32x128xf32, #tpu.memory_space<vmem>>, vector<32x128xf32>
    %cst = arith.constant dense<0.000000e+00> : vector<8x128xf32>
    %6 = tpu.matmul %4, %5, %cst {dimension_numbers = #tpu.dot_dimension_numbers<[1], [0], [0], [1], [0, 0, 1, 1], [], []>} : vector<8x32xf32>, vector<32x128xf32>, vector<8x128xf32> -> vector<8x128xf32>
    %c0_5 = arith.constant 0 : index
    %c0_6 = arith.constant 0 : index
    %7 = vector.load %arg10[%c0_5, %c0_6] : memref<1x128xf32, #tpu.memory_space<vmem>>, vector<1x128xf32>
    %8 = vector.broadcast %7 : vector<1x128xf32> to vector<8x128xf32>
    %9 = arith.addf %6, %8 : vector<8x128xf32>
    %c0_7 = arith.constant 0 : index
    %c0_8 = arith.constant 0 : index
    %c0_9 = arith.constant 0 : index
    %10 = vector.load %arg5[%c0_7, %c0_8, %c0_9] : memref<1x8x32xf32, #tpu.memory_space<vmem>>, vector<1x8x32xf32>
    %11 = vector.shape_cast %10 : vector<1x8x32xf32> to vector<8x32xf32>
    %c0_10 = arith.constant 0 : index
    %c0_11 = arith.constant 0 : index
    %12 = vector.load %arg8[%c0_10, %c0_11] : memref<32x128xf32, #tpu.memory_space<vmem>>, vector<32x128xf32>
    %cst_12 = arith.constant dense<0.000000e+00> : vector<8x128xf32>
    %13 = tpu.matmul %11, %12, %cst_12 {dimension_numbers = #tpu.dot_dimension_numbers<[1], [0], [0], [1], [0, 0, 1, 1], [], []>} : vector<8x32xf32>, vector<32x128xf32>, vector<8x128xf32> -> vector<8x128xf32>
    %c0_13 = arith.constant 0 : index
    %c0_14 = arith.constant 0 : index
    %14 = vector.load %arg11[%c0_13, %c0_14] : memref<1x128xf32, #tpu.memory_space<vmem>>, vector<1x128xf32>
    %15 = vector.broadcast %14 : vector<1x128xf32> to vector<8x128xf32>
    %16 = arith.addf %13, %15 : vector<8x128xf32>
    %c0_15 = arith.constant 0 : index
    %c0_16 = arith.constant 0 : index
    %17 = vector.load %arg13[%c0_15, %c0_16] : memref<8x128xf32, #tpu.memory_space<vmem>>, vector<8x128xf32>
    %18 = arith.truncf %17 : vector<8x128xf32> to vector<8x128xbf16>
    %19 = arith.truncf %9 : vector<8x128xf32> to vector<8x128xbf16>
    %cst_17 = arith.constant dense<0.000000e+00> : vector<8x8xf32>
    %20 = tpu.matmul %18, %19, %cst_17 {dimension_numbers = #tpu.dot_dimension_numbers<[1], [1], [0], [0], [0, 0, 1, 0], [], []>} : vector<8x128xbf16>, vector<8x128xbf16>, vector<8x8xf32> -> vector<8x8xf32>
    %c0_18 = arith.constant 0 : index
    %c0_19 = arith.constant 0 : index
    %21 = vector.load %arg14[%c0_18, %c0_19] : memref<8x1xf32, #tpu.memory_space<vmem>>, vector<8x1xf32>
    %cst_20 = arith.constant dense<0xFF800000> : vector<8xf32>
    %22 = vector.multi_reduction <maximumf>, %20, %cst_20 [1] : vector<8x8xf32> to vector<8xf32>
    %23 = vector.shape_cast %22 : vector<8xf32> to vector<8x1xf32>
    %24 = arith.maximumf %21, %23 : vector<8x1xf32>
    %c0_21 = arith.constant 0 : index
    %c0_22 = arith.constant 0 : index
    %25 = vector.load %arg14[%c0_21, %c0_22] : memref<8x1xf32, #tpu.memory_space<vmem>>, vector<8x1xf32>
    %26 = arith.subf %25, %24 : vector<8x1xf32>
    %27 = math.exp %26 : vector<8x1xf32>
    %28 = vector.broadcast %24 : vector<8x1xf32> to vector<8x8xf32>
    %29 = arith.subf %20, %28 : vector<8x8xf32>
    %30 = math.exp %29 : vector<8x8xf32>
    %c0_23 = arith.constant 0 : index
    %c0_24 = arith.constant 0 : index
    %31 = vector.load %arg15[%c0_23, %c0_24] : memref<8x1xf32, #tpu.memory_space<vmem>>, vector<8x1xf32>
    %32 = arith.mulf %27, %31 : vector<8x1xf32>
    %cst_25 = arith.constant dense<0.000000e+00> : vector<8xf32>
    %33 = vector.multi_reduction <add>, %30, %cst_25 [1] : vector<8x8xf32> to vector<8xf32>
    %34 = vector.shape_cast %33 : vector<8xf32> to vector<8x1xf32>
    %35 = arith.addf %32, %34 : vector<8x1xf32>
    %c0_26 = arith.constant 0 : index
    %c0_27 = arith.constant 0 : index
    %36 = vector.load %arg15[%c0_26, %c0_27] : memref<8x1xf32, #tpu.memory_space<vmem>>, vector<8x1xf32>
    tpu.vector_store %arg15[%c0_26, %c0_27], %35 {strides = array<i32>} : memref<8x1xf32, #tpu.memory_space<vmem>>, vector<8x1xf32>,
    %c0_28 = arith.constant 0 : index
    %c0_29 = arith.constant 0 : index
    %37 = vector.load %arg16[%c0_28, %c0_29] : memref<8x128xf32, #tpu.memory_space<vmem>>, vector<8x128xf32>
    %38 = vector.broadcast %27 : vector<8x1xf32> to vector<8x128xf32>
    %39 = arith.mulf %38, %37 : vector<8x128xf32>
    %40 = arith.truncf %30 : vector<8x8xf32> to vector<8x8xbf16>
    %41 = arith.truncf %16 : vector<8x128xf32> to vector<8x128xbf16>
    %cst_30 = arith.constant dense<0.000000e+00> : vector<8x128xf32>
    %42 = tpu.matmul %40, %41, %cst_30 {dimension_numbers = #tpu.dot_dimension_numbers<[1], [0], [0], [1], [0, 0, 1, 1], [], []>} : vector<8x8xbf16>, vector<8x128xbf16>, vector<8x128xf32> -> vector<8x128xf32>
    %43 = arith.addf %39, %42 : vector<8x128xf32>
    %c0_31 = arith.constant 0 : index
    %c0_32 = arith.constant 0 : index
    %44 = vector.load %arg16[%c0_31, %c0_32] : memref<8x128xf32, #tpu.memory_space<vmem>>, vector<8x128xf32>
    tpu.vector_store %arg16[%c0_31, %c0_32], %43 {strides = array<i32>} : memref<8x128xf32, #tpu.memory_space<vmem>>, vector<8x128xf32>,
    %c0_33 = arith.constant 0 : index
    %c0_34 = arith.constant 0 : index
    %45 = vector.load %arg14[%c0_33, %c0_34] : memref<8x1xf32, #tpu.memory_space<vmem>>, vector<8x1xf32>
    tpu.vector_store %arg14[%c0_33, %c0_34], %24 {strides = array<i32>} : memref<8x1xf32, #tpu.memory_space<vmem>>, vector<8x1xf32>,
    %c0_i32_35 = arith.constant 0 : i32
    %46 = arith.cmpi eq, %arg2, %c0_i32_35 : i32
    %47 = arith.extui %46 : i1 to i32
    %c0_i32_36 = arith.constant 0 : i32
    %48 = arith.cmpi ne, %47, %c0_i32_36 : i32
    scf.if %48 {
      %c0_37 = arith.constant 0 : index
      %c0_38 = arith.constant 0 : index
      %49 = vector.load %arg15[%c0_37, %c0_38] : memref<8x1xf32, #tpu.memory_space<vmem>>, vector<8x1xf32>
      %50 = tpu.reciprocal %49 {approx = true} : vector<8x1xf32> -> vector<8x1xf32>
      %c0_39 = arith.constant 0 : index
      %c0_40 = arith.constant 0 : index
      %51 = vector.load %arg16[%c0_39, %c0_40] : memref<8x128xf32, #tpu.memory_space<vmem>>, vector<8x128xf32>
      %52 = vector.broadcast %50 : vector<8x1xf32> to vector<8x128xf32>
      %53 = arith.mulf %51, %52 : vector<8x128xf32>
      %c0_41 = arith.constant 0 : index
      %c0_42 = arith.constant 0 : index
      %c0_43 = arith.constant 0 : index
      %54 = vector.load %arg12[%c0_41, %c0_42, %c0_43] : memref<1x8x128xf32, #tpu.memory_space<vmem>>, vector<1x8x128xf32>
      %55 = vector.shape_cast %54 : vector<1x8x128xf32> to vector<8x128xf32>
      %56 = vector.shape_cast %53 : vector<8x128xf32> to vector<1x8x128xf32>
      tpu.vector_store %arg12[%c0_41, %c0_42, %c0_43], %56 {strides = array<i32>} : memref<1x8x128xf32, #tpu.memory_space<vmem>>, vector<1x8x128xf32>,
    } else {
    }
    return
  }
  func.func @transform_0(%arg0: i32, %arg1: i32, %arg2: i32) -> (i32, i32, i32) {
    %c0_i32 = arith.constant 0 : i32
    %c0_i32_0 = arith.constant 0 : i32
    return %arg0, %arg1, %c0_i32 : i32, i32, i32
  }
  func.func @transform_1(%arg0: i32, %arg1: i32, %arg2: i32) -> (i32, i32, i32) {
    %c0_i32 = arith.constant 0 : i32
    %c0_i32_0 = arith.constant 0 : i32
    return %arg0, %arg2, %c0_i32 : i32, i32, i32
  }
  func.func @transform_2(%arg0: i32, %arg1: i32, %arg2: i32) -> (i32, i32, i32) {
    %c0_i32 = arith.constant 0 : i32
    %c0_i32_0 = arith.constant 0 : i32
    return %arg0, %arg2, %c0_i32 : i32, i32, i32
  }
  func.func @transform_3(%arg0: i32, %arg1: i32, %arg2: i32) -> (i32, i32) {
    %c0_i32 = arith.constant 0 : i32
    %c0_i32_0 = arith.constant 0 : i32
    %c0_i32_1 = arith.constant 0 : i32
    return %c0_i32, %c0_i32_0 : i32, i32
  }
  func.func @transform_4(%arg0: i32, %arg1: i32, %arg2: i32) -> (i32, i32) {
    %c0_i32 = arith.constant 0 : i32
    %c0_i32_0 = arith.constant 0 : i32
    %c0_i32_1 = arith.constant 0 : i32
    return %c0_i32, %c0_i32_0 : i32, i32
  }
  func.func @transform_5(%arg0: i32, %arg1: i32, %arg2: i32) -> (i32, i32) {
    %c0_i32 = arith.constant 0 : i32
    %c0_i32_0 = arith.constant 0 : i32
    %c0_i32_1 = arith.constant 0 : i32
    return %c0_i32, %c0_i32_0 : i32, i32
  }
  func.func @transform_6(%arg0: i32, %arg1: i32, %arg2: i32) -> (i32, i32) {
    %c0_i32 = arith.constant 0 : i32
    %c0_i32_0 = arith.constant 0 : i32
    %c0_i32_1 = arith.constant 0 : i32
    return %c0_i32, %c0_i32_0 : i32, i32
  }
  func.func @transform_7(%arg0: i32, %arg1: i32, %arg2: i32) -> (i32, i32) {
    %c0_i32 = arith.constant 0 : i32
    %c0_i32_0 = arith.constant 0 : i32
    %c0_i32_1 = arith.constant 0 : i32
    return %c0_i32, %c0_i32_0 : i32, i32
  }
  func.func @transform_8(%arg0: i32, %arg1: i32, %arg2: i32) -> (i32, i32) {
    %c0_i32 = arith.constant 0 : i32
    %c0_i32_0 = arith.constant 0 : i32
    %c0_i32_1 = arith.constant 0 : i32
    return %c0_i32, %c0_i32_0 : i32, i32
  }
  func.func @transform_9(%arg0: i32, %arg1: i32, %arg2: i32) -> (i32, i32, i32) {
    %c0_i32 = arith.constant 0 : i32
    %c0_i32_0 = arith.constant 0 : i32
    return %arg0, %arg1, %c0_i32 : i32, i32, i32
  }
}

</mosaic_0001>

<llo_original>
// kernel: tpu_custom_call.1
$region0: #{tpu_custom_call.1}
  #allocation0 [shape = 'u32[]', space=smem, size = 0x4, offset = 0x4, fixed_abs, tag = 'smem constant byte address 0x4 - core index']
  #allocation1 [shape = 'u32[72,128]{1,0:T(1,128)}', space=vmem, size = 0x9000, scoped, tag = 'internal scratch']
  #allocation2 [shape = 'f32[8,128]{1,0:T(8,128)}', space=vmem, size = 0x1000, scoped, tag = 'scratch operand']
  #allocation3 [shape = 'f32[8,1]{1,0:T(8,128)}', space=vmem, size = 0x1000, scoped, tag = 'scratch operand']
  #allocation4 [shape = 'f32[8,1]{1,0:T(8,128)}', space=vmem, size = 0x1000, scoped, tag = 'scratch operand']
  #allocation5 [shape = 'f32[8,128]{1,0:T(8,128)}', space=vmem, size = 0x1000, scoped, tag = 'scratch operand']
  %s0 = inlined_call_operand.hbm [shape: f32[2,8,32], index: 0, kind: input, shape index: {}]
  %s1 = inlined_call_operand.hbm [shape: f32[2,8,32], index: 1, kind: input, shape index: {}]
  %s2 = inlined_call_operand.hbm [shape: f32[2,8,32], index: 2, kind: input, shape index: {}]
  %s3 = inlined_call_operand.hbm [shape: f32[32,128], index: 3, kind: input, shape index: {}]
  %s4 = inlined_call_operand.hbm [shape: f32[32,128], index: 4, kind: input, shape index: {}]
  %s5 = inlined_call_operand.hbm [shape: f32[32,128], index: 5, kind: input, shape index: {}]
  %s6 = inlined_call_operand.vmem [shape: f32[1,128], index: 6, kind: input, shape index: {}]
  %s7 = inlined_call_operand.vmem [shape: f32[1,128], index: 7, kind: input, shape index: {}]
  %s8 = inlined_call_operand.vmem [shape: f32[1,128], index: 8, kind: input, shape index: {}]
  %s9 = inlined_call_operand.hbm [shape: f32[2,8,128], index: 9, kind: output, shape index: {}]
  %s10 = sld [smem:[#allocation0]]
  $region101: #{tpu_custom_call.1} parent=0
    _
  %s12 = ssub.s32 1, %s10
  %s13 = scalar_select 0, %s12, %s10
  $region1: #{tpu_custom_call.1} parent=0
    #allocation6 [shape = 'u8[8192]{0}', space=vmem, size = 0x2000, scoped, tag = 'input window, operand 0']
    #allocation7 [shape = 's32[2]{0}', space=sflag, size = 0x8, scoped, tag = 'scoped memory for tpu_custom_call.1']
    #allocation8 [shape = 's32[2]{0}', space=sflag, size = 0x8, scoped, tag = 'scoped memory for tpu_custom_call.1']
    #allocation9 [shape = 'u8[8192]{0}', space=vmem, size = 0x2000, scoped, tag = 'input window, operand 1']
    #allocation10 [shape = 's32[2]{0}', space=sflag, size = 0x8, scoped, tag = 'scoped memory for tpu_custom_call.1']
    #allocation11 [shape = 'u8[8192]{0}', space=vmem, size = 0x2000, scoped, tag = 'input window, operand 2']
    #allocation12 [shape = 'u8[16384]{0}', space=vmem, size = 0x4000, scoped, tag = 'input window, operand 3, single buffered']
    #allocation13 [shape = 's32[1]{0}', space=sflag, size = 0x4, scoped, tag = 'scoped memory for tpu_custom_call.1']
    #allocation14 [shape = 'u8[16384]{0}', space=vmem, size = 0x4000, scoped, tag = 'input window, operand 4, single buffered']
    #allocation15 [shape = 'u8[16384]{0}', space=vmem, size = 0x4000, scoped, tag = 'input window, operand 5, single buffered']
    #allocation16 [shape = 's32[1]{0}', space=sflag, size = 0x4, scoped, tag = 'scoped memory for tpu_custom_call.1']
    #allocation17 [shape = 'u8[8192]{0}', space=vmem, size = 0x2000, scoped, tag = 'output window, operand 0']
    %14 = vsyncpa [#allocation7], 0
    %s15 = scalar_lea.sflag [#allocation7], 1
    %16 = vsyncpa %s15, 0
    %17 = vsyncpa [#allocation10], 0
    %s18 = scalar_lea.sflag [#allocation10], 1
    %19 = vsyncpa %s18, 0
    %20 = vsyncpa [#allocation13], 0
    %21 = vsyncpa [#allocation16], 0
    %22 = vsyncpa [#allocation8], 0
    %s23 = scalar_lea.sflag [#allocation8], 1
    %24 = vsyncpa %s23, 0
    loop: start=0, step=1, limit=4
    $region2: #{tpu_custom_call.1} parent=1 // loop_pre_header
      _
    $region3: #{tpu_custom_call.1} parent=1 // loop_header
      %s26 = sphi 0, %s30
      %p27 = scmp.ge.s32.totalorder %s26, 4
      %s33 = sphi 0, %s52
      %s34 = sphi 0, %s48
      %s35 = sphi 0, %s44
      %s36 = sphi 0, %s33
      %s37 = sphi 0, %s34
      %s38 = sphi 0, %s35
      %s39 = sphi 0, %s36
      %s40 = sphi 0, %s37
      %s41 = sphi 0, %s38
      %s57 = sphi 0, %s59
      %s60 = sphi 0, %s57
      %s61 = sphi 0, %s60
      %s77 = sphi 0, %s61
      %s85 = sphi 0, %s87
      %s88 = sphi 0, %s85
      %s89 = sphi 0, %s88
      %s105 = sphi 0, %s89
      %s113 = sphi 0, %s115
      %s116 = sphi 0, %s113
      %s117 = sphi 0, %s116
      %s133 = sphi 0, %s117
      %s137 = sphi 0, %s137
      %s139 = sphi 0, %s137
      %s140 = sphi 0, %s139
      %s154 = sphi 0, %s140
      %s158 = sphi 0, %s158
      %s160 = sphi 0, %s158
      %s161 = sphi 0, %s160
      %s175 = sphi 0, %s161
      %s179 = sphi 0, %s179
      %s181 = sphi 0, %s179
      %s182 = sphi 0, %s181
      %s196 = sphi 0, %s182
      %s200 = sphi 0, %s200
      %s202 = sphi 0, %s200
      %s203 = sphi 0, %s202
      %s217 = sphi 0, %s203
      %s221 = sphi 0, %s221
      %s223 = sphi 0, %s221
      %s224 = sphi 0, %s223
      %s238 = sphi 0, %s224
      %s242 = sphi 0, %s242
      %s244 = sphi 0, %s242
      %s245 = sphi 0, %s244
      %s259 = sphi 0, %s245
      %s267 = sphi 0, %s269
      %s270 = sphi 0, %s267
      %s271 = sphi 0, %s270
      %s287 = sphi 0, %s271
    $region4: #{tpu_custom_call.1} parent=1 // loop_header_branch
      %29 = sbr.rel (%p27) target = $region8
    $region5: #{tpu_custom_call.1} parent=1 // loop_body
      %s31 = ssub.s32 %s26, 1
      %s32 = ssub.s32 %s26, 2
      %s42 = sadd.s32 1, %s35
      %p43 = scmp.ge.s32.totalorder %s42, 1
      %s44 = scalar_select %p43, 0, %s42
      %s45 = sadd.s32 1, %s34
      %s46 = scalar_select %p43, %s45, %s34
      %p47 = scmp.ge.s32.totalorder %s46, 1
      %s48 = scalar_select %p47, 0, %s46
      %s49 = sadd.s32 1, %s33
      %s50 = scalar_select %p47, %s49, %s33
      %p51 = scmp.ge.s32.totalorder %s50, 2
      %s52 = scalar_select %p51, 0, %s50
      %s53 = ssub.s32 %s33, %s52
      %s54 = ssub.s32 %s34, %s48
      %s55 = sor.u32 %s53, %s54
      %p56 = scmp.eq.s32.totalorder %s55, 0
      %s58 = sadd.s32 %s57, 1
      %s59 = scalar_select %p56, %s57, %s58
      %p62 = pneg %p56
      %p63 = scmp.eq.s32.totalorder %s26, 1
      %p64 = por %p62, %p63
      %p65 = scmp.ne.s32.totalorder %s57, %s60
      %p66 = scmp.eq.s32.totalorder %s26, 0
      %p67 = por %p65, %p66
      %p68 = scmp.ne.s32.totalorder %s57, %s60
      %p69 = scmp.eq.s32.totalorder %s31, 1
      %p70 = por %p68, %p69
      %p71 = scmp.ne.s32.totalorder %s60, %s61
      %p72 = scmp.eq.s32.totalorder %s31, 0
      %p73 = por %p71, %p72
      %p74 = scmp.ne.s32.totalorder %s60, %s61
      %p75 = scmp.eq.s32.totalorder %s32, 1
      %p76 = por %p74, %p75
      %p78 = scmp.ne.s32.totalorder %s61, %s77
      %p79 = scmp.eq.s32.totalorder %s32, 0
      %p80 = por %p78, %p79
      %s81 = ssub.s32 %s33, %s52
      %s82 = ssub.s32 %s35, %s44
      %s83 = sor.u32 %s81, %s82
      %p84 = scmp.eq.s32.totalorder %s83, 0
      %s86 = sadd.s32 %s85, 1
      %s87 = scalar_select %p84, %s85, %s86
      %p90 = pneg %p84
      %p91 = scmp.eq.s32.totalorder %s26, 1
      %p92 = por %p90, %p91
      %p93 = scmp.ne.s32.totalorder %s85, %s88
      %p94 = scmp.eq.s32.totalorder %s26, 0
      %p95 = por %p93, %p94
      %p96 = scmp.ne.s32.totalorder %s85, %s88
      %p97 = scmp.eq.s32.totalorder %s31, 1
      %p98 = por %p96, %p97
      %p99 = scmp.ne.s32.totalorder %s88, %s89
      %p100 = scmp.eq.s32.totalorder %s31, 0
      %p101 = por %p99, %p100
      %p102 = scmp.ne.s32.totalorder %s88, %s89
      %p103 = scmp.eq.s32.totalorder %s32, 1
      %p104 = por %p102, %p103
      %p106 = scmp.ne.s32.totalorder %s89, %s105
      %p107 = scmp.eq.s32.totalorder %s32, 0
      %p108 = por %p106, %p107
      %s109 = ssub.s32 %s33, %s52
      %s110 = ssub.s32 %s35, %s44
      %s111 = sor.u32 %s109, %s110
      %p112 = scmp.eq.s32.totalorder %s111, 0
      %s114 = sadd.s32 %s113, 1
      %s115 = scalar_select %p112, %s113, %s114
      %p118 = pneg %p112
      %p119 = scmp.eq.s32.totalorder %s26, 1
      %p120 = por %p118, %p119
      %p121 = scmp.ne.s32.totalorder %s113, %s116
      %p122 = scmp.eq.s32.totalorder %s26, 0
      %p123 = por %p121, %p122
      %p124 = scmp.ne.s32.totalorder %s113, %s116
      %p125 = scmp.eq.s32.totalorder %s31, 1
      %p126 = por %p124, %p125
      %p127 = scmp.ne.s32.totalorder %s116, %s117
      %p128 = scmp.eq.s32.totalorder %s31, 0
      %p129 = por %p127, %p128
      %p130 = scmp.ne.s32.totalorder %s116, %s117
      %p131 = scmp.eq.s32.totalorder %s32, 1
      %p132 = por %p130, %p131
      %p134 = scmp.ne.s32.totalorder %s117, %s133
      %p135 = scmp.eq.s32.totalorder %s32, 0
      %p136 = por %p134, %p135
      %s138 = sadd.s32 %s137, 1
      %p141 = scmp.eq.s32.totalorder %s26, 1
      %p142 = scmp.ne.s32.totalorder %s137, %s139
      %p143 = scmp.eq.s32.totalorder %s26, 0
      %p144 = por %p142, %p143
      %p145 = scmp.ne.s32.totalorder %s137, %s139
      %p146 = scmp.eq.s32.totalorder %s31, 1
      %p147 = por %p145, %p146
      %p148 = scmp.ne.s32.totalorder %s139, %s140
      %p149 = scmp.eq.s32.totalorder %s31, 0
      %p150 = por %p148, %p149
      %p151 = scmp.ne.s32.totalorder %s139, %s140
      %p152 = scmp.eq.s32.totalorder %s32, 1
      %p153 = por %p151, %p152
      %p155 = scmp.ne.s32.totalorder %s140, %s154
      %p156 = scmp.eq.s32.totalorder %s32, 0
      %p157 = por %p155, %p156
      %s159 = sadd.s32 %s158, 1
      %p162 = scmp.eq.s32.totalorder %s26, 1
      %p163 = scmp.ne.s32.totalorder %s158, %s160
      %p164 = scmp.eq.s32.totalorder %s26, 0
      %p165 = por %p163, %p164
      %p166 = scmp.ne.s32.totalorder %s158, %s160
      %p167 = scmp.eq.s32.totalorder %s31, 1
      %p168 = por %p166, %p167
      %p169 = scmp.ne.s32.totalorder %s160, %s161
      %p170 = scmp.eq.s32.totalorder %s31, 0
      %p171 = por %p169, %p170
      %p172 = scmp.ne.s32.totalorder %s160, %s161
      %p173 = scmp.eq.s32.totalorder %s32, 1
      %p174 = por %p172, %p173
      %p176 = scmp.ne.s32.totalorder %s161, %s175
      %p177 = scmp.eq.s32.totalorder %s32, 0
      %p178 = por %p176, %p177
      %s180 = sadd.s32 %s179, 1
      %p183 = scmp.eq.s32.totalorder %s26, 1
      %p184 = scmp.ne.s32.totalorder %s179, %s181
      %p185 = scmp.eq.s32.totalorder %s26, 0
      %p186 = por %p184, %p185
      %p187 = scmp.ne.s32.totalorder %s179, %s181
      %p188 = scmp.eq.s32.totalorder %s31, 1
      %p189 = por %p187, %p188
      %p190 = scmp.ne.s32.totalorder %s181, %s182
      %p191 = scmp.eq.s32.totalorder %s31, 0
      %p192 = por %p190, %p191
      %p193 = scmp.ne.s32.totalorder %s181, %s182
      %p194 = scmp.eq.s32.totalorder %s32, 1
      %p195 = por %p193, %p194
      %p197 = scmp.ne.s32.totalorder %s182, %s196
      %p198 = scmp.eq.s32.totalorder %s32, 0
      %p199 = por %p197, %p198
      %s201 = sadd.s32 %s200, 1
      %p204 = scmp.eq.s32.totalorder %s26, 1
      %p205 = scmp.ne.s32.totalorder %s200, %s202
      %p206 = scmp.eq.s32.totalorder %s26, 0
      %p207 = por %p205, %p206
      %p208 = scmp.ne.s32.totalorder %s200, %s202
      %p209 = scmp.eq.s32.totalorder %s31, 1
      %p210 = por %p208, %p209
      %p211 = scmp.ne.s32.totalorder %s202, %s203
      %p212 = scmp.eq.s32.totalorder %s31, 0
      %p213 = por %p211, %p212
      %p214 = scmp.ne.s32.totalorder %s202, %s203
      %p215 = scmp.eq.s32.totalorder %s32, 1
      %p216 = por %p214, %p215
      %p218 = scmp.ne.s32.totalorder %s203, %s217
      %p219 = scmp.eq.s32.totalorder %s32, 0
      %p220 = por %p218, %p219
      %s222 = sadd.s32 %s221, 1
      %p225 = scmp.eq.s32.totalorder %s26, 1
      %p226 = scmp.ne.s32.totalorder %s221, %s223
      %p227 = scmp.eq.s32.totalorder %s26, 0
      %p228 = por %p226, %p227
      %p229 = scmp.ne.s32.totalorder %s221, %s223
      %p230 = scmp.eq.s32.totalorder %s31, 1
      %p231 = por %p229, %p230
      %p232 = scmp.ne.s32.totalorder %s223, %s224
      %p233 = scmp.eq.s32.totalorder %s31, 0
      %p234 = por %p232, %p233
      %p235 = scmp.ne.s32.totalorder %s223, %s224
      %p236 = scmp.eq.s32.totalorder %s32, 1
      %p237 = por %p235, %p236
      %p239 = scmp.ne.s32.totalorder %s224, %s238
      %p240 = scmp.eq.s32.totalorder %s32, 0
      %p241 = por %p239, %p240
      %s243 = sadd.s32 %s242, 1
      %p246 = scmp.eq.s32.totalorder %s26, 1
      %p247 = scmp.ne.s32.totalorder %s242, %s244
      %p248 = scmp.eq.s32.totalorder %s26, 0
      %p249 = por %p247, %p248
      %p250 = scmp.ne.s32.totalorder %s242, %s244
      %p251 = scmp.eq.s32.totalorder %s31, 1
      %p252 = por %p250, %p251
      %p253 = scmp.ne.s32.totalorder %s244, %s245
      %p254 = scmp.eq.s32.totalorder %s31, 0
      %p255 = por %p253, %p254
      %p256 = scmp.ne.s32.totalorder %s244, %s245
      %p257 = scmp.eq.s32.totalorder %s32, 1
      %p258 = por %p256, %p257
      %p260 = scmp.ne.s32.totalorder %s245, %s259
      %p261 = scmp.eq.s32.totalorder %s32, 0
      %p262 = por %p260, %p261
      %s263 = ssub.s32 %s33, %s52
      %s264 = ssub.s32 %s34, %s48
      %s265 = sor.u32 %s263, %s264
      %p266 = scmp.eq.s32.totalorder %s265, 0
      %s268 = sadd.s32 %s267, 1
      %s269 = scalar_select %p266, %s267, %s268
      %p272 = pneg %p266
      %p273 = scmp.eq.s32.totalorder %s26, 1
      %p274 = por %p272, %p273
      %p275 = scmp.ne.s32.totalorder %s267, %s270
      %p276 = scmp.eq.s32.totalorder %s26, 0
      %p277 = por %p275, %p276
      %p278 = scmp.ne.s32.totalorder %s267, %s270
      %p279 = scmp.eq.s32.totalorder %s31, 1
      %p280 = por %p278, %p279
      %p281 = scmp.ne.s32.totalorder %s270, %s271
      %p282 = scmp.eq.s32.totalorder %s31, 0
      %p283 = por %p281, %p282
      %p284 = scmp.ne.s32.totalorder %s270, %s271
      %p285 = scmp.eq.s32.totalorder %s32, 1
      %p286 = por %p284, %p285
      %p288 = scmp.ne.s32.totalorder %s271, %s287
      %p289 = scmp.eq.s32.totalorder %s32, 0
      %p290 = por %p288, %p289
      %p291 = scmp.le.s32.totalorder 1, %s26
      %p292 = scmp.lt.s32.totalorder %s26, 3
      %p293 = pnand %p291, %p292
      %p294 = pneg %p293
      // Predicated region
      $region9: #{tpu_custom_call.1} parent=5 // pred_check
        _
      $region10: #{tpu_custom_call.1} parent=5 // pred_check_branch
        %296 = sbr.rel (%p293) target = $region12
      $region11: #{tpu_custom_call.1} parent=5 // pred_region
        %s297 = ssub.s32 %s26, 1
        // Predicated region
        $region13: #{tpu_custom_call.1} parent=11 // pred_check
          %p298 = pneg %p150
        $region14: #{tpu_custom_call.1} parent=11 // pred_check_branch
          %300 = sbr.rel (%p298) target = $region16
        $region15: #{tpu_custom_call.1} parent=11 // pred_region
          %302 = vsyncadd [#allocation13], 0
          %s303 = sshll.u32 %s3, 4
          %s304 = int_to_ptr.hbm [resolvable:$true] %s303
          %s305 = sshll.u32 [#allocation12], 4
          %s306 = int_to_ptr.vmem [resolvable:$true] %s305
          %311 = dma.hbm_to_vmem [thread:$0]  %s304, 512, %s306, [#allocation13], 128, 128, 8
        $region16: #{tpu_custom_call.1} parent=11 // pred_fallthru
          _
        // Predicated region
        $region17: #{tpu_custom_call.1} parent=11 // pred_check
          %p312 = pneg %p171
        $region18: #{tpu_custom_call.1} parent=11 // pred_check_branch
          %314 = sbr.rel (%p312) target = $region20
        $region19: #{tpu_custom_call.1} parent=11 // pred_region
          %316 = vsyncadd [#allocation13], 0
          %s317 = sshll.u32 %s4, 4
          %s318 = int_to_ptr.hbm [resolvable:$true] %s317
          %s319 = sshll.u32 [#allocation14], 4
          %s320 = int_to_ptr.vmem [resolvable:$true] %s319
          %325 = dma.hbm_to_vmem [thread:$0]  %s318, 512, %s320, [#allocation13], 128, 128, 8
        $region20: #{tpu_custom_call.1} parent=11 // pred_fallthru
          _
        // Predicated region
        $region21: #{tpu_custom_call.1} parent=11 // pred_check
          %p326 = pneg %p192
        $region22: #{tpu_custom_call.1} parent=11 // pred_check_branch
          %328 = sbr.rel (%p326) target = $region24
        $region23: #{tpu_custom_call.1} parent=11 // pred_region
          %330 = vsyncadd [#allocation16], 0
          %s331 = sshll.u32 %s5, 4
          %s332 = int_to_ptr.hbm [resolvable:$true] %s331
          %s333 = sshll.u32 [#allocation15], 4
          %s334 = int_to_ptr.vmem [resolvable:$true] %s333
          %339 = dma.hbm_to_vmem [thread:$0]  %s332, 512, %s334, [#allocation16], 128, 128, 8
        $region24: #{tpu_custom_call.1} parent=11 // pred_fallthru
          _
        // Predicated region
        $region25: #{tpu_custom_call.1} parent=11 // pred_check
          %p340 = pneg %p213
        $region26: #{tpu_custom_call.1} parent=11 // pred_check_branch
          %342 = sbr.rel (%p340) target = $region28
        $region27: #{tpu_custom_call.1} parent=11 // pred_region
          _
        $region28: #{tpu_custom_call.1} parent=11 // pred_fallthru
          _
        // Predicated region
        $region29: #{tpu_custom_call.1} parent=11 // pred_check
          %p343 = pneg %p234
        $region30: #{tpu_custom_call.1} parent=11 // pred_check_branch
          %345 = sbr.rel (%p343) target = $region32
        $region31: #{tpu_custom_call.1} parent=11 // pred_region
          _
        $region32: #{tpu_custom_call.1} parent=11 // pred_fallthru
          _
        // Predicated region
        $region33: #{tpu_custom_call.1} parent=11 // pred_check
          %p346 = pneg %p255
        $region34: #{tpu_custom_call.1} parent=11 // pred_check_branch
          %348 = sbr.rel (%p346) target = $region36
        $region35: #{tpu_custom_call.1} parent=11 // pred_region
          _
        $region36: #{tpu_custom_call.1} parent=11 // pred_fallthru
          _
      $region12: #{tpu_custom_call.1} parent=5 // pred_fallthru
        _
      %p349 = scmp.lt.s32.totalorder %s26, 2
      // Predicated region
      $region37: #{tpu_custom_call.1} parent=5 // pred_check
        %p350 = pneg %p349
      $region38: #{tpu_custom_call.1} parent=5 // pred_check_branch
        %352 = sbr.rel (%p350) target = $region40
      $region39: #{tpu_custom_call.1} parent=5 // pred_region
        // Predicated region
        $region41: #{tpu_custom_call.1} parent=39 // pred_check
          %p353 = pneg %p67
        $region42: #{tpu_custom_call.1} parent=39 // pred_check_branch
          %355 = sbr.rel (%p353) target = $region44
        $region43: #{tpu_custom_call.1} parent=39 // pred_region
          %s356 = sand.u32 %s57, 1
          %s357 = scalar_lea.sflag [#allocation7], %s356
          %s358 = sand.u32 %s57, 1
          %s359 = smul.addr %s358, 8
          %s360 = scalar_lea.vmem [#allocation6], %s359
          %362 = vsyncadd %s357, 0
          %s363 = sadd.s32 %s34, %s33
          %s364 = smul.addr %s363, 8
          %s365 = scalar_lea.hbm %s0, %s364
          %s367 = sshll.u32 %s365, 4
          %s368 = int_to_ptr.hbm [resolvable:$true] %s367
          %s369 = sshll.u32 %s360, 4
          %s370 = int_to_ptr.vmem [resolvable:$true] %s369
          %372 = dma.hbm_to_vmem [thread:$0]  %s368, 128, %s370, %s357
        $region44: #{tpu_custom_call.1} parent=39 // pred_fallthru
          _
        // Predicated region
        $region45: #{tpu_custom_call.1} parent=39 // pred_check
          %p373 = pneg %p95
        $region46: #{tpu_custom_call.1} parent=39 // pred_check_branch
          %375 = sbr.rel (%p373) target = $region48
        $region47: #{tpu_custom_call.1} parent=39 // pred_region
          %s376 = sand.u32 %s26, 1
          %s377 = scalar_lea.sflag [#allocation10], %s376
          %s378 = sand.u32 %s85, 1
          %s379 = smul.addr %s378, 8
          %s380 = scalar_lea.vmem [#allocation9], %s379
          %382 = vsyncadd %s377, 0
          %s383 = sadd.s32 %s35, %s33
          %s384 = smul.addr %s383, 8
          %s385 = scalar_lea.hbm %s1, %s384
          %s387 = sshll.u32 %s385, 4
          %s388 = int_to_ptr.hbm [resolvable:$true] %s387
          %s389 = sshll.u32 %s380, 4
          %s390 = int_to_ptr.vmem [resolvable:$true] %s389
          %392 = dma.hbm_to_vmem [thread:$0]  %s388, 128, %s390, %s377
        $region48: #{tpu_custom_call.1} parent=39 // pred_fallthru
          _
        // Predicated region
        $region49: #{tpu_custom_call.1} parent=39 // pred_check
          %p393 = pneg %p123
        $region50: #{tpu_custom_call.1} parent=39 // pred_check_branch
          %395 = sbr.rel (%p393) target = $region52
        $region51: #{tpu_custom_call.1} parent=39 // pred_region
          %s396 = sand.u32 %s26, 1
          %s397 = scalar_lea.sflag [#allocation10], %s396
          %s398 = sand.u32 %s113, 1
          %s399 = smul.addr %s398, 8
          %s400 = scalar_lea.vmem [#allocation11], %s399
          %402 = vsyncadd %s397, 0
          %s403 = sadd.s32 %s35, %s33
          %s404 = smul.addr %s403, 8
          %s405 = scalar_lea.hbm %s2, %s404
          %s407 = sshll.u32 %s405, 4
          %s408 = int_to_ptr.hbm [resolvable:$true] %s407
          %s409 = sshll.u32 %s400, 4
          %s410 = int_to_ptr.vmem [resolvable:$true] %s409
          %412 = dma.hbm_to_vmem [thread:$0]  %s408, 128, %s410, %s397
        $region52: #{tpu_custom_call.1} parent=39 // pred_fallthru
          _
      $region40: #{tpu_custom_call.1} parent=5 // pred_fallthru
        _
      %p413 = scmp.le.s32.totalorder 1, %s26
      %p414 = scmp.lt.s32.totalorder %s26, 3
      %p415 = pnand %p413, %p414
      %p416 = pneg %p415
      // Predicated region
      $region53: #{tpu_custom_call.1} parent=5 // pred_check
        _
      $region54: #{tpu_custom_call.1} parent=5 // pred_check_branch
        %418 = sbr.rel (%p415) target = $region56
      $region55: #{tpu_custom_call.1} parent=5 // pred_region
        %s419 = ssub.s32 %s26, 1
        %s420 = sand.u32 %s60, 1
        %s421 = scalar_lea.sflag [#allocation7], %s420
        %s422 = sand.u32 %s60, 1
        %s423 = smul.addr %s422, 8
        %s424 = scalar_lea.vmem [#allocation6], %s423
        // Predicated region
        $region57: #{tpu_custom_call.1} parent=55 // pred_check
          %p425 = pneg %p73
        $region58: #{tpu_custom_call.1} parent=55 // pred_check_branch
          %427 = sbr.rel (%p425) target = $region60
        $region59: #{tpu_custom_call.1} parent=55 // pred_region
          %429 = dma.done %s421, 128
        $region60: #{tpu_custom_call.1} parent=55 // pred_fallthru
          _
        %s430 = sand.u32 %s31, 1
        %s431 = scalar_lea.sflag [#allocation10], %s430
        %s432 = sand.u32 %s88, 1
        %s433 = smul.addr %s432, 8
        %s434 = scalar_lea.vmem [#allocation9], %s433
        // Predicated region
        $region61: #{tpu_custom_call.1} parent=55 // pred_check
          %p435 = pneg %p101
        $region62: #{tpu_custom_call.1} parent=55 // pred_check_branch
          %437 = sbr.rel (%p435) target = $region64
        $region63: #{tpu_custom_call.1} parent=55 // pred_region
          %439 = dma.done %s431, 128
        $region64: #{tpu_custom_call.1} parent=55 // pred_fallthru
          _
        %s440 = sand.u32 %s31, 1
        %s441 = scalar_lea.sflag [#allocation10], %s440
        %s442 = sand.u32 %s116, 1
        %s443 = smul.addr %s442, 8
        %s444 = scalar_lea.vmem [#allocation11], %s443
        // Predicated region
        $region65: #{tpu_custom_call.1} parent=55 // pred_check
          %p445 = pneg %p129
        $region66: #{tpu_custom_call.1} parent=55 // pred_check_branch
          %447 = sbr.rel (%p445) target = $region68
        $region67: #{tpu_custom_call.1} parent=55 // pred_region
          %449 = dma.done %s441, 128
        $region68: #{tpu_custom_call.1} parent=55 // pred_fallthru
          _
        // Predicated region
        $region69: #{tpu_custom_call.1} parent=55 // pred_check
          %p450 = pneg %p150
        $region70: #{tpu_custom_call.1} parent=55 // pred_check_branch
          %452 = sbr.rel (%p450) target = $region72
        $region71: #{tpu_custom_call.1} parent=55 // pred_region
          %454 = dma.done [#allocation13], 512
        $region72: #{tpu_custom_call.1} parent=55 // pred_fallthru
          _
        // Predicated region
        $region73: #{tpu_custom_call.1} parent=55 // pred_check
          %p455 = pneg %p171
        $region74: #{tpu_custom_call.1} parent=55 // pred_check_branch
          %457 = sbr.rel (%p455) target = $region76
        $region75: #{tpu_custom_call.1} parent=55 // pred_region
          %459 = dma.done [#allocation13], 512
        $region76: #{tpu_custom_call.1} parent=55 // pred_fallthru
          _
        // Predicated region
        $region77: #{tpu_custom_call.1} parent=55 // pred_check
          %p460 = pneg %p192
        $region78: #{tpu_custom_call.1} parent=55 // pred_check_branch
          %462 = sbr.rel (%p460) target = $region80
        $region79: #{tpu_custom_call.1} parent=55 // pred_region
          %464 = dma.done [#allocation16], 512
        $region80: #{tpu_custom_call.1} parent=55 // pred_fallthru
          _
        %s465 = sand.u32 %s60, 1
        %s466 = scalar_lea.sflag [#allocation7], %s465
        %s467 = sand.u32 %s60, 1
        %s468 = smul.addr %s467, 8
        %s469 = scalar_lea.vmem [#allocation6], %s468
        %p470 = pneg %p73
        %p471 = pneg %p70
        %s472 = sand.u32 %s31, 1
        %s473 = scalar_lea.sflag [#allocation10], %s472
        %s474 = sand.u32 %s88, 1
        %s475 = smul.addr %s474, 8
        %s476 = scalar_lea.vmem [#allocation9], %s475
        %p477 = pneg %p101
        %p478 = pneg %p98
        %s479 = sand.u32 %s31, 1
        %s480 = scalar_lea.sflag [#allocation10], %s479
        %s481 = sand.u32 %s116, 1
        %s482 = smul.addr %s481, 8
        %s483 = scalar_lea.vmem [#allocation11], %s482
        %p484 = pneg %p129
        %p485 = pneg %p126
        %p486 = pneg %p150
        %p487 = pneg %p147
        %p488 = pneg %p171
        %p489 = pneg %p168
        %p490 = pneg %p192
        %p491 = pneg %p189
        %p492 = pneg %p213
        %p493 = pneg %p210
        %p494 = pneg %p234
        %p495 = pneg %p231
        %p496 = pneg %p255
        %p497 = pneg %p252
        %p498 = pneg %p283
        %p499 = pneg %p280
        %s500 = sand.u32 %s270, 1
        %s501 = scalar_lea.sflag [#allocation8], %s500
        %s502 = sand.u32 %s270, 1
        %s503 = smul.addr %s502, 8
        %s504 = scalar_lea.vmem [#allocation17], %s503
        %p506 = scmp.eq.s32.totalorder %s38, 0
        // Predicated region
        $region81: #{tpu_custom_call.1} parent=55 // pred_check
          %p507 = pneg %p506
        $region82: #{tpu_custom_call.1} parent=55 // pred_check_branch
          %509 = sbr.rel (%p507) target = $region84
        $region83: #{tpu_custom_call.1} parent=55 // pred_region
          %v510 = vld [vmem:[%s424] sm:$0xff]
          %v511 = vld [vmem:[#allocation12] sm:$0xff]
          %v512 = vld [vmem:[#allocation12 + $0x8] sm:$0xff]
          %v513 = vld [vmem:[#allocation12 + $0x10] sm:$0xff]
          %v514 = vld [vmem:[#allocation12 + $0x18] sm:$0xff]
          %v515 = vld [vmem:[%s6] sm:$0x1]
          %v517 = vperm.slane %v515, 0
          %vm519 = vcmask 261120
          %v521 = vsel %vm519, %v510, 0
          %523 = vmatpush.msra.mxu0 0.0
          %524 = vmatpush.msra.mxu0 0.0
          %525 = vmatpush.msra.mxu0 0.0
          %526 = vmatpush.msra.mxu0 0.0
          %527 = vmatpush.msra.mxu0 0.0
          %528 = vmatpush.msra.mxu0 0.0
          %529 = vmatpush.msra.mxu0 0.0
          %530 = vmatpush.msra.mxu0 0.0
          %531 = vmatpush.msra.mxu0 0.0
          %532 = vmatpush.msra.mxu0 0.0
          %533 = vmatpush.msra.mxu0 0.0
          %534 = vmatpush.msra.mxu0 0.0
          %535 = vmatpush.msra.mxu0 %v514
          %536 = vmatpush.msra.mxu0 %v513
          %537 = vmatpush.msra.mxu0 %v512
          %538 = vmatpush.msra.mxu0 %v511
          %539 = vmatmul.f32.gmra.mxu0 %v521
          %v540 = vpop.f32.mrf.mxu0
          %v541 = vadd.f32 %v517, %v540
          %542 = vdwg.mxu0
          %543 = vst [vmem:[#allocation2] sm:$0xff] %v541
          %vm544 = vcmask 7168
          %545 = vst.msk [vmem:[#allocation3] sm:$0xff] %vm544, -inf
          %546 = vst.msk [vmem:[#allocation4] sm:$0xff] %vm544, 0.0
          %547 = vst [vmem:[#allocation5] sm:$0xff] 0.0
        $region84: #{tpu_custom_call.1} parent=55 // pred_fallthru
          _
        %v548 = vld [vmem:[%s434] sm:$0xff]
        %v549 = vld [vmem:[#allocation14] sm:$0xff]
        %v550 = vld [vmem:[#allocation14 + $0x8] sm:$0xff]
        %v551 = vld [vmem:[#allocation14 + $0x10] sm:$0xff]
        %v552 = vld [vmem:[#allocation14 + $0x18] sm:$0xff]
        %v553 = vld [vmem:[%s7] sm:$0x1]
        %v555 = vperm.slane %v553, 0
        %vm557 = vcmask 261120
        %v559 = vsel %vm557, %v548, 0
        %561 = vmatpush.msra.mxu0 0.0
        %562 = vmatpush.msra.mxu0 0.0
        %563 = vmatpush.msra.mxu0 0.0
        %564 = vmatpush.msra.mxu0 0.0
        %565 = vmatpush.msra.mxu0 0.0
        %566 = vmatpush.msra.mxu0 0.0
        %567 = vmatpush.msra.mxu0 0.0
        %568 = vmatpush.msra.mxu0 0.0
        %569 = vmatpush.msra.mxu0 0.0
        %570 = vmatpush.msra.mxu0 0.0
        %571 = vmatpush.msra.mxu0 0.0
        %572 = vmatpush.msra.mxu0 0.0
        %573 = vmatpush.msra.mxu0 %v552
        %574 = vmatpush.msra.mxu0 %v551
        %575 = vmatpush.msra.mxu0 %v550
        %576 = vmatpush.msra.mxu0 %v549
        %577 = vmatmul.f32.gmra.mxu0 %v559
        %v578 = vpop.f32.mrf.mxu0
        %v579 = vadd.f32 %v555, %v578
        %580 = vdwg.mxu0
        %v581 = vld [vmem:[%s444] sm:$0xff]
        %v582 = vld [vmem:[#allocation15] sm:$0xff]
        %v583 = vld [vmem:[#allocation15 + $0x8] sm:$0xff]
        %v584 = vld [vmem:[#allocation15 + $0x10] sm:$0xff]
        %v585 = vld [vmem:[#allocation15 + $0x18] sm:$0xff]
        %v586 = vld [vmem:[%s8] sm:$0x1]
        %v588 = vperm.slane %v586, 0
        %v591 = vsel %vm557, %v581, 0
        %593 = vmatpush.msra.mxu0 0.0
        %594 = vmatpush.msra.mxu0 0.0
        %595 = vmatpush.msra.mxu0 0.0
        %596 = vmatpush.msra.mxu0 0.0
        %597 = vmatpush.msra.mxu0 0.0
        %598 = vmatpush.msra.mxu0 0.0
        %599 = vmatpush.msra.mxu0 0.0
        %600 = vmatpush.msra.mxu0 0.0
        %601 = vmatpush.msra.mxu0 0.0
        %602 = vmatpush.msra.mxu0 0.0
        %603 = vmatpush.msra.mxu0 0.0
        %604 = vmatpush.msra.mxu0 0.0
        %605 = vmatpush.msra.mxu0 %v585
        %606 = vmatpush.msra.mxu0 %v584
        %607 = vmatpush.msra.mxu0 %v583
        %608 = vmatpush.msra.mxu0 %v582
        %609 = vmatmul.f32.gmra.mxu0 %v591
        %v610 = vpop.f32.mrf.mxu0
        %v611 = vadd.f32 %v588, %v610
        %612 = vdwg.mxu0
        %v613 = vld [vmem:[#allocation2] sm:$0xff]
        %v614 = vpack.c.bf16 %v613, %v613
        %v615 = vpack.c.bf16 %v579, %v579
        %616 = vmatpush.bf16.xpose.msra.mxu0 0
        %617 = vmatpush.bf16.xpose.msra.mxu0 0
        %618 = vmatpush.bf16.xpose.msra.mxu0 0
        %619 = vmatpush.bf16.xpose.msra.mxu0 0
        %620 = vmatpush.bf16.xpose.msra.mxu0 0
        %621 = vmatpush.bf16.xpose.msra.mxu0 0
        %622 = vmatpush.bf16.xpose.msra.mxu0 0
        %623 = vmatpush.bf16.xpose.msra.mxu0 %v615
        %624 = vmatmul.bf16.gmra.mxu0 %v614
        %v625 = vpop.f32.mrf.mxu0
        %v626 = vadd.f32 0.0, %v625
        %v627 = vpop.f32.mrf.mxu0
        %628 = vdwg.mxu0
        %v629 = vld [vmem:[#allocation3] sm:$0xff]
        %vm630 = vcmask 64512
        %v631 = vsel %vm630, %v626, -inf
        %632 = vmax.xlane.f32.xlu0 %v631
        %v633 = vpop.xlane.xlu0 %632
        %v634 = vmax.f32 %v629, %v633
        %v635 = vsub.f32 %v629, %v634
        %v636 = vmul.f32 %v635, 1.442695
        %v637 = vpow.pop %v636
        %639 = vset.pattern.permute.xlu0 0
        %640 = vperm.xlu0 %639, %v634
        %v641 = vpop.permute.xlu0 %640
        %v643 = vsub.f32 %v626, %v641
        %v644 = vmul.f32 %v643, 1.442695
        %v645 = vpow.pop %v644
        %v646 = vld [vmem:[#allocation4] sm:$0xff]
        %v647 = vmul.f32 %v637, %v646
        %v648 = vsel %vm630, %v645, 0.0
        %649 = vadd.xlane.f32.xlu0 %v648
        %v650 = vpop.xlane.xlu0 %649
        %v651 = vadd.f32 %v647, %v650
        %vm652 = vcmask 7168
        %653 = vst.msk [vmem:[#allocation4] sm:$0xff] %vm652, %v651
        %v654 = vld [vmem:[#allocation5] sm:$0xff]
        %656 = vset.pattern.permute.xlu0 0
        %657 = vperm.xlu0 %656, %v637
        %v658 = vpop.permute.xlu0 %657
        %v660 = vmul.f32 %v658, %v654
        %v661 = vpack.c.bf16 %v645, %v645
        %v662 = vpack.c.bf16 %v611, %v611
        %v664 = vsel %vm630, %v661, 0
        %vm666 = vcmask 1043456
        %v668 = vsel %vm666, %v662, 0
        %670 = vmatpush.bf16.msra.mxu0 0
        %671 = vmatpush.bf16.msra.mxu0 0
        %672 = vmatpush.bf16.msra.mxu0 0
        %673 = vmatpush.bf16.msra.mxu0 0
        %674 = vmatpush.bf16.msra.mxu0 0
        %675 = vmatpush.bf16.msra.mxu0 0
        %676 = vmatpush.bf16.msra.mxu0 0
        %677 = vmatpush.bf16.msra.mxu0 %v668
        %678 = vmatmul.bf16.gmra.mxu0 %v664
        %v679 = vpop.f32.mrf.mxu0
        %v680 = vadd.f32 0.0, %v679
        %v681 = vpop.f32.mrf.mxu0
        %682 = vdwg.mxu0
        %v683 = vadd.f32 %v660, %v680
        %684 = vst [vmem:[#allocation5] sm:$0xff] %v683
        %685 = vst.msk [vmem:[#allocation3] sm:$0xff] %vm652, %v634
        // Predicated region
        $region85: #{tpu_custom_call.1} parent=55 // pred_check
          %p686 = pneg %p506
        $region86: #{tpu_custom_call.1} parent=55 // pred_check_branch
          %688 = sbr.rel (%p686) target = $region88
        $region87: #{tpu_custom_call.1} parent=55 // pred_region
          %v689 = vld [vmem:[#allocation4] sm:$0xff]
          %v690 = vrcp.pop %v689
          %v691 = vld [vmem:[#allocation5] sm:$0xff]
          %693 = vset.pattern.permute.xlu0 0
          %694 = vperm.xlu0 %693, %v690
          %v695 = vpop.permute.xlu0 %694
          %v697 = vmul.f32 %v691, %v695
          %698 = vst [vmem:[%s504] sm:$0xff] %v697
        $region88: #{tpu_custom_call.1} parent=55 // pred_fallthru
          _
        %s699 = sand.u32 %s270, 1
        %s700 = scalar_lea.sflag [#allocation8], %s699
        %s701 = sand.u32 %s270, 1
        %s702 = smul.addr %s701, 8
        %s703 = scalar_lea.vmem [#allocation17], %s702
        // Predicated region
        $region89: #{tpu_custom_call.1} parent=55 // pred_check
          %p704 = pneg %p280
        $region90: #{tpu_custom_call.1} parent=55 // pred_check_branch
          %706 = sbr.rel (%p704) target = $region92
        $region91: #{tpu_custom_call.1} parent=55 // pred_region
          %708 = vsyncadd %s700, 0
          %s709 = sadd.s32 %s37, %s36
          %s710 = smul.addr %s709, 8
          %s711 = scalar_lea.hbm %s9, %s710
          %s713 = sshll.u32 %s703, 4
          %s714 = int_to_ptr.vmem [resolvable:$true] %s713
          %s715 = sshll.u32 %s711, 4
          %s716 = int_to_ptr.hbm [resolvable:$true] %s715
          %718 = dma.vmem_to_hbm [thread:$0]  %s714, 128, %s716, %s700
        $region92: #{tpu_custom_call.1} parent=55 // pred_fallthru
          _
      $region56: #{tpu_custom_call.1} parent=5 // pred_fallthru
        _
      %p719 = scmp.le.s32.totalorder 2, %s26
      // Predicated region
      $region93: #{tpu_custom_call.1} parent=5 // pred_check
        %p720 = pneg %p719
      $region94: #{tpu_custom_call.1} parent=5 // pred_check_branch
        %722 = sbr.rel (%p720) target = $region96
      $region95: #{tpu_custom_call.1} parent=5 // pred_region
        %s723 = ssub.s32 %s26, 2
        // Predicated region
        $region97: #{tpu_custom_call.1} parent=95 // pred_check
          %p724 = pneg %p286
        $region98: #{tpu_custom_call.1} parent=95 // pred_check_branch
          %726 = sbr.rel (%p724) target = $region100
        $region99: #{tpu_custom_call.1} parent=95 // pred_region
          %s727 = sand.u32 %s271, 1
          %s728 = scalar_lea.sflag [#allocation8], %s727
          %s729 = sand.u32 %s271, 1
          %s730 = smul.addr %s729, 8
          %s731 = scalar_lea.vmem [#allocation17], %s730
          %733 = dma.done %s728, 128
        $region100: #{tpu_custom_call.1} parent=95 // pred_fallthru
          _
      $region96: #{tpu_custom_call.1} parent=5 // pred_fallthru
        _
    $region6: #{tpu_custom_call.1} parent=1 // loop_footer
      %s30 = sadd.s32 1, %s26
    $region7: #{tpu_custom_call.1} parent=1 // loop_footer_branch
      %25 = sbr.rel target = $region3
    $region8: #{tpu_custom_call.1} parent=1 // loop_exit
      _
    %734 = vsyncpa [#allocation7], 1
    %s735 = scalar_lea.sflag [#allocation7], 1
    %736 = vsyncpa %s735, 1
    %737 = vsyncpa [#allocation10], 1
    %s738 = scalar_lea.sflag [#allocation10], 1
    %739 = vsyncpa %s738, 1
    %740 = vsyncpa [#allocation13], 1
    %741 = vsyncpa [#allocation16], 1
    %742 = vsyncpa [#allocation8], 1
    %s743 = scalar_lea.sflag [#allocation8], 1
    %744 = vsyncpa %s743, 1

</llo_original>
